<compile_context>
chip_gen: v7x
topology: tpu7x:2x2x1
jax: 0.10.0
libtpu: 0.0.40
codegen_flags: <defaults>
</compile_context>

<pallas_src>
import jax
import jax.numpy as jnp
from jax import lax
from jax.experimental import pallas as pl
from jax.experimental.pallas import tpu as pltpu


def _tpu_generation():
    """Best-effort chip-generation detection at trace (Python) time."""
    # TODO(synk): switch to pltpu.get_tpu_info() chip-version fields once the
    # attribute names are stable; device_kind is enough to pick byte budgets.
    try:
        kind = jax.devices()[0].device_kind.lower()
    except Exception:
        kind = ""
    if "v7" in kind:
        return 7
    if "v6" in kind:
        return 6
    return 5


def _make_counts_kernel(rows, wide, block_rows, steps, needs_mask):
    """Grid (ncores, steps): accumulate nonzero-AND / nonzero-OR lane counts."""
    groups = block_rows // 8

    def kernel(p_ref, t_ref, inter_ref, union_ref, acc_and_ref, acc_or_ref):
        j = pl.program_id(1)

        @pl.when(j == 0)
        def _init():
            acc_and_ref[...] = jnp.zeros_like(acc_and_ref)
            acc_or_ref[...] = jnp.zeros_like(acc_or_ref)

        # Pure VPU work per step; hidden under the input DMAs (mem-bound).
        p_nz = p_ref[...] != 0
        t_nz = t_ref[...] != 0
        both = jnp.logical_and(t_nz, p_nz)
        either = jnp.logical_or(t_nz, p_nz)

        if needs_mask:
            # Partial last block (and a possibly wholly-out-of-range clamped
            # block on the second core): zero contributions of rows >= rows.
            start = (pl.program_id(0) * steps + j) * block_rows
            row_ids = start + lax.broadcasted_iota(
                jnp.int32, (block_rows, wide), 0)
            valid = row_ids < rows
            both = jnp.logical_and(both, valid)
            either = jnp.logical_and(either, valid)

        # Sublane-group partial sum into small (8, wide) accumulators:
        # lane dim stays last -> vreg-aligned adds, no relayout, few stores.
        both_i = both.astype(jnp.int32).reshape(groups, 8, wide)
        either_i = either.astype(jnp.int32).reshape(groups, 8, wide)
        acc_and_ref[...] += jnp.sum(both_i, axis=0)
        acc_or_ref[...] += jnp.sum(either_i, axis=0)

        # Epilogue: just dump per-lane partials; scalar reduce in the wrapper.
        @pl.when(j == pl.num_programs(1) - 1)
        def _finalize():
            inter_ref[0] = acc_and_ref[...]
            union_ref[0] = acc_or_ref[...]

    return kernel


def _jaccard_counts(y_pred, y_true):
    p = y_pred.reshape(-1)          # free reshape; keep native dtype
    t = y_true.reshape(-1)
    n = p.shape[0]

    # Lane-dense last dim: largest option that divides n with >= 8 rows, so
    # common power-of-two segmentation shapes avoid any padding copy.
    wide = None
    for w in (1024, 512, 256, 128):
        if n % w == 0 and n >= 8 * w:
            wide = w
            break
    if wide is None:
        # n not a multiple of 128 (or tiny): zero-pad the flat arrays; zeros
        # contribute to neither count.
        # TODO(synk): remove this residual copy for large non-128-aligned
        # inputs with a manual 1-D DMA + scalar-prefetched element count.
        wide = 128
        rows = max(8, -(-n // 128))
        n_pad = rows * 128
        p = jnp.pad(p, (0, n_pad - n))
        t = jnp.pad(t, (0, n_pad - n))
        n = n_pad
    rows = n // wide

    gen = _tpu_generation()
    if gen >= 7:
        block_budget_bytes = 4 << 20   # amortize ~0.35us/step at ~3.2 TB/s HBM
        ncores = 2                     # 2 TensorCores per chip
    elif gen == 6:
        block_budget_bytes = 2 << 20
        ncores = 1                     # single TC: no core split
    else:
        block_budget_bytes = 1 << 20   # v5e already ~85-90% of HBM roofline
        ncores = 1

    itemsize = max(p.dtype.itemsize, t.dtype.itemsize)
    budget_rows = max(8, (block_budget_bytes // (itemsize * wide)) // 8 * 8)
    block_rows = min(budget_rows, (rows // 8) * 8)   # multiple of 8, <= rows
    blocks = -(-rows // block_rows)
    if blocks < ncores:
        ncores = 1
    steps = -(-blocks // ncores)
    covered = ncores * steps
    needs_mask = (blocks * block_rows != rows) or (covered != blocks)

    if covered == blocks:
        def in_map(c, j):
            return (c * steps + j, 0)
    else:
        last_block = blocks - 1

        def in_map(c, j):
            # Clamp the single overflow block; its contribution is zeroed by
            # the in-kernel row mask (logical start >= rows).
            return (jnp.minimum(c * steps + j, last_block), 0)

    out_map = lambda c, j: (c, 0, 0)

    if ncores > 1:
        # CORE_PARALLEL guarantees the 2-TC split on v7x.
        core_sem = getattr(pltpu, "CORE_PARALLEL", None) or "parallel"
        dim_sem = (core_sem, "arbitrary")
    else:
        dim_sem = ("arbitrary", "arbitrary")

    block_bytes = block_rows * wide * itemsize
    vmem_limit = int(2 * 2 * block_bytes          # 2 inputs, double-buffered
                     + 2 * 8 * wide * 4           # (8, wide) accumulators
                     + 2 * 2 * 8 * wide * 4       # outputs, double-buffered
                     + (8 << 20))                 # headroom

    kernel = _make_counts_kernel(rows, wide, block_rows, steps, needs_mask)

    inter_p, union_p = pl.pallas_call(
        kernel,
        out_shape=(jax.ShapeDtypeStruct((ncores, 8, wide), jnp.int32),
                   jax.ShapeDtypeStruct((ncores, 8, wide), jnp.int32)),
        grid_spec=pltpu.PrefetchScalarGridSpec(
            num_scalar_prefetch=0,
            grid=(ncores, steps),
            in_specs=[pl.BlockSpec((block_rows, wide), in_map),
                      pl.BlockSpec((block_rows, wide), in_map)],
            out_specs=(pl.BlockSpec((1, 8, wide), out_map),
                       pl.BlockSpec((1, 8, wide), out_map)),
            scratch_shapes=[pltpu.VMEM((8, wide), jnp.int32),
                            pltpu.VMEM((8, wide), jnp.int32)],
        ),
        compiler_params=pltpu.CompilerParams(
            dimension_semantics=dim_sem,
            vmem_limit_bytes=vmem_limit),
    )(p.reshape(rows, wide), t.reshape(rows, wide))

    # Per-lane partial counts -> scalars. float32 accumulation avoids the hard
    # int32 overflow beyond ~2.1e9 nonzeros; any rounding beyond 2^24 is
    # irrelevant for a loss ratio, and the union == 0 test stays exact.
    inter = jnp.sum(inter_p, dtype=jnp.float32)
    union = jnp.sum(union_p, dtype=jnp.float32)
    return inter, union


@jax.jit
def jaccard_loss(y_pred, y_true):
    """Forward pass of JaccardLoss. Returns a float32 scalar."""
    inter, union = _jaccard_counts(y_pred, y_true)
    safe_union = jnp.where(union == 0, jnp.float32(1.0), union)
    return jnp.where(union == 0, jnp.float32(0.0),
                     jnp.float32(1.0) - inter / safe_union)


if __name__ == "__main__":
    key = jax.random.PRNGKey(0)
    k1, k2, k3, k4 = jax.random.split(key, 4)

    def ref_loss(yp, yt):
        i = jnp.sum(jnp.logical_and(yt != 0, yp != 0)).astype(jnp.float32)
        u = jnp.sum(jnp.logical_or(yt != 0, yp != 0)).astype(jnp.float32)
        return jnp.where(u == 0, jnp.float32(0.0), jnp.float32(1.0) - i / u)

    # NCHW, as the PyTorch module would receive from a segmentation head.
    B, C, H, W = 2, 4, 16, 16
    y_pred = jax.random.normal(k1, (B, C, H, W), dtype=jnp.float32)
    y_true = jax.random.bernoulli(k2, p=0.3, shape=(B, C, H, W)).astype(jnp.float32)
    loss = jax.block_until_ready(jaccard_loss(y_pred, y_true))
    assert abs(float(loss) - float(ref_loss(y_pred, y_true))) < 1e-6, float(loss)

    # Non-tile-aligned shape: exercises the in-kernel row-mask path and the
    # multi-step accumulation over the reduction grid axis.
    yp2 = jax.random.normal(k3, (3, 5, 7, 11), dtype=jnp.float32)
    yt2 = jax.random.bernoulli(k4, p=0.4, shape=(3, 5, 7, 11)).astype(jnp.float32)
    loss2 = jax.block_until_ready(jaccard_loss(yp2, yt2))
    assert abs(float(loss2) - float(ref_loss(yp2, yt2))) < 1e-6, float(loss2)

    # union == 0 branch (jnp.where inside jit; no host round-trip).
    zeros = jnp.zeros((B, C, H, W), jnp.float32)
    zl = jax.block_until_ready(jaccard_loss(zeros, zeros))
    assert float(zl) == 0.0

    print("KERNEL_OK")
</pallas_src>

<mosaic_0001>
module attributes {stable_mosaic.version = 11 : i64} {
  func.func @kernel(%arg0: i32, %arg1: i32, %arg2: memref<8x256xf32, #tpu.memory_space<vmem>>, %arg3: memref<8x256xf32, #tpu.memory_space<vmem>>, %arg4: memref<1x8x256xi32, #tpu.memory_space<vmem>>, %arg5: memref<1x8x256xi32, #tpu.memory_space<vmem>>, %arg6: memref<8x256xi32, #tpu.memory_space<vmem>>, %arg7: memref<8x256xi32, #tpu.memory_space<vmem>>) attributes {dimension_semantics = [#tpu.dimension_semantics<arbitrary>, #tpu.dimension_semantics<arbitrary>], iteration_bounds = array<i64: 1, 1>, scalar_prefetch = 0 : i64, scratch_operands = 2 : i64, tpu.core_type = #tpu.core_type<tc>, window_params = [{transform_indices = @transform_0, window_bounds = array<i64: 8, 256>}, {transform_indices = @transform_1, window_bounds = array<i64: 8, 256>}, {transform_indices = @transform_2, window_bounds = array<i64: 1, 8, 256>}, {transform_indices = @transform_3, window_bounds = array<i64: 1, 8, 256>}]} {
    %c0_i32 = arith.constant 0 : i32
    %0 = arith.cmpi eq, %arg1, %c0_i32 : i32
    %1 = arith.extui %0 : i1 to i32
    %c0_i32_0 = arith.constant 0 : i32
    %2 = arith.cmpi ne, %1, %c0_i32_0 : i32
    scf.if %2 {
      %c0_i32_17 = arith.constant 0 : i32
      %26 = vector.broadcast %c0_i32_17 : i32 to vector<8x256xi32>
      %c0_18 = arith.constant 0 : index
      %c0_19 = arith.constant 0 : index
      %27 = vector.load %arg6[%c0_18, %c0_19] : memref<8x256xi32, #tpu.memory_space<vmem>>, vector<8x256xi32>
      tpu.vector_store %arg6[%c0_18, %c0_19], %26 {strides = array<i32>} : memref<8x256xi32, #tpu.memory_space<vmem>>, vector<8x256xi32>,
      %c0_i32_20 = arith.constant 0 : i32
      %28 = vector.broadcast %c0_i32_20 : i32 to vector<8x256xi32>
      %c0_21 = arith.constant 0 : index
      %c0_22 = arith.constant 0 : index
      %29 = vector.load %arg7[%c0_21, %c0_22] : memref<8x256xi32, #tpu.memory_space<vmem>>, vector<8x256xi32>
      tpu.vector_store %arg7[%c0_21, %c0_22], %28 {strides = array<i32>} : memref<8x256xi32, #tpu.memory_space<vmem>>, vector<8x256xi32>,
    } else {
    }
    %c0 = arith.constant 0 : index
    %c0_1 = arith.constant 0 : index
    %3 = vector.load %arg2[%c0, %c0_1] : memref<8x256xf32, #tpu.memory_space<vmem>>, vector<8x256xf32>
    %cst = arith.constant 0.000000e+00 : f32
    %4 = vector.broadcast %cst : f32 to vector<8x256xf32>
    %5 = arith.cmpf one, %3, %4 : vector<8x256xf32>
    %c0_2 = arith.constant 0 : index
    %c0_3 = arith.constant 0 : index
    %6 = vector.load %arg3[%c0_2, %c0_3] : memref<8x256xf32, #tpu.memory_space<vmem>>, vector<8x256xf32>
    %cst_4 = arith.constant 0.000000e+00 : f32
    %7 = vector.broadcast %cst_4 : f32 to vector<8x256xf32>
    %8 = arith.cmpf one, %6, %7 : vector<8x256xf32>
    %9 = arith.andi %8, %5 : vector<8x256xi1>
    %10 = arith.ori %8, %5 : vector<8x256xi1>
    %11 = arith.extui %9 : vector<8x256xi1> to vector<8x256xi32>
    %12 = vector.shape_cast %11 : vector<8x256xi32> to vector<1x8x256xi32>
    %13 = arith.extui %10 : vector<8x256xi1> to vector<8x256xi32>
    %14 = vector.shape_cast %13 : vector<8x256xi32> to vector<1x8x256xi32>
    %c0_5 = arith.constant 0 : index
    %c0_6 = arith.constant 0 : index
    %15 = vector.load %arg6[%c0_5, %c0_6] : memref<8x256xi32, #tpu.memory_space<vmem>>, vector<8x256xi32>
    %cst_7 = arith.constant dense<0> : vector<8x256xi32>
    %16 = vector.multi_reduction <add>, %12, %cst_7 [0] : vector<1x8x256xi32> to vector<8x256xi32>
    %17 = arith.addi %15, %16 : vector<8x256xi32>
    %c0_8 = arith.constant 0 : index
    %c0_9 = arith.constant 0 : index
    %18 = vector.load %arg6[%c0_8, %c0_9] : memref<8x256xi32, #tpu.memory_space<vmem>>, vector<8x256xi32>
    tpu.vector_store %arg6[%c0_8, %c0_9], %17 {strides = array<i32>} : memref<8x256xi32, #tpu.memory_space<vmem>>, vector<8x256xi32>,
    %c0_10 = arith.constant 0 : index
    %c0_11 = arith.constant 0 : index
    %19 = vector.load %arg7[%c0_10, %c0_11] : memref<8x256xi32, #tpu.memory_space<vmem>>, vector<8x256xi32>
    %cst_12 = arith.constant dense<0> : vector<8x256xi32>
    %20 = vector.multi_reduction <add>, %14, %cst_12 [0] : vector<1x8x256xi32> to vector<8x256xi32>
    %21 = arith.addi %19, %20 : vector<8x256xi32>
    %c0_13 = arith.constant 0 : index
    %c0_14 = arith.constant 0 : index
    %22 = vector.load %arg7[%c0_13, %c0_14] : memref<8x256xi32, #tpu.memory_space<vmem>>, vector<8x256xi32>
    tpu.vector_store %arg7[%c0_13, %c0_14], %21 {strides = array<i32>} : memref<8x256xi32, #tpu.memory_space<vmem>>, vector<8x256xi32>,
    %c0_i32_15 = arith.constant 0 : i32
    %23 = arith.cmpi eq, %arg1, %c0_i32_15 : i32
    %24 = arith.extui %23 : i1 to i32
    %c0_i32_16 = arith.constant 0 : i32
    %25 = arith.cmpi ne, %24, %c0_i32_16 : i32
    scf.if %25 {
      %c0_17 = arith.constant 0 : index
      %c0_18 = arith.constant 0 : index
      %26 = vector.load %arg6[%c0_17, %c0_18] : memref<8x256xi32, #tpu.memory_space<vmem>>, vector<8x256xi32>
      %c0_19 = arith.constant 0 : index
      %c0_20 = arith.constant 0 : index
      %c0_21 = arith.constant 0 : index
      %27 = vector.load %arg4[%c0_19, %c0_20, %c0_21] : memref<1x8x256xi32, #tpu.memory_space<vmem>>, vector<1x8x256xi32>
      %28 = vector.shape_cast %27 : vector<1x8x256xi32> to vector<8x256xi32>
      %29 = vector.shape_cast %26 : vector<8x256xi32> to vector<1x8x256xi32>
      tpu.vector_store %arg4[%c0_19, %c0_20, %c0_21], %29 {strides = array<i32>} : memref<1x8x256xi32, #tpu.memory_space<vmem>>, vector<1x8x256xi32>,
      %c0_22 = arith.constant 0 : index
      %c0_23 = arith.constant 0 : index
      %30 = vector.load %arg7[%c0_22, %c0_23] : memref<8x256xi32, #tpu.memory_space<vmem>>, vector<8x256xi32>
      %c0_24 = arith.constant 0 : index
      %c0_25 = arith.constant 0 : index
      %c0_26 = arith.constant 0 : index
      %31 = vector.load %arg5[%c0_24, %c0_25, %c0_26] : memref<1x8x256xi32, #tpu.memory_space<vmem>>, vector<1x8x256xi32>
      %32 = vector.shape_cast %31 : vector<1x8x256xi32> to vector<8x256xi32>
      %33 = vector.shape_cast %30 : vector<8x256xi32> to vector<1x8x256xi32>
      tpu.vector_store %arg5[%c0_24, %c0_25, %c0_26], %33 {strides = array<i32>} : memref<1x8x256xi32, #tpu.memory_space<vmem>>, vector<1x8x256xi32>,
    } else {
    }
    return
  }
  func.func @transform_0(%arg0: i32, %arg1: i32) -> (i32, i32) {
    %c1_i32 = arith.constant 1 : i32
    %0 = arith.muli %arg0, %c1_i32 : i32
    %1 = arith.addi %0, %arg1 : i32
    %c0_i32 = arith.constant 0 : i32
    %c0_i32_0 = arith.constant 0 : i32
    return %1, %c0_i32 : i32, i32
  }
  func.func @transform_1(%arg0: i32, %arg1: i32) -> (i32, i32) {
    %c1_i32 = arith.constant 1 : i32
    %0 = arith.muli %arg0, %c1_i32 : i32
    %1 = arith.addi %0, %arg1 : i32
    %c0_i32 = arith.constant 0 : i32
    %c0_i32_0 = arith.constant 0 : i32
    return %1, %c0_i32 : i32, i32
  }
  func.func @transform_2(%arg0: i32, %arg1: i32) -> (i32, i32, i32) {
    %c0_i32 = arith.constant 0 : i32
    %c0_i32_0 = arith.constant 0 : i32
    %c0_i32_1 = arith.constant 0 : i32
    return %arg0, %c0_i32, %c0_i32_0 : i32, i32, i32
  }
  func.func @transform_3(%arg0: i32, %arg1: i32) -> (i32, i32, i32) {
    %c0_i32 = arith.constant 0 : i32
    %c0_i32_0 = arith.constant 0 : i32
    %c0_i32_1 = arith.constant 0 : i32
    return %arg0, %c0_i32, %c0_i32_0 : i32, i32, i32
  }
}

</mosaic_0001>

<llo_original>
// kernel: jaccard_loss.1
$region0: #{jaccard_loss.1}
  #allocation0 [shape = 'u32[]', space=smem, size = 0x4, offset = 0x4, fixed_abs, tag = 'smem constant byte address 0x4 - core index']
  #allocation1 [shape = 'u32[144,128]{1,0:T(1,128)}', space=vmem, size = 0x12000, scoped, tag = 'internal scratch']
  #allocation2 [shape = 's32[8,256]{1,0:T(8,128)}', space=vmem, size = 0x2000, scoped, tag = 'scratch operand']
  #allocation3 [shape = 's32[8,256]{1,0:T(8,128)}', space=vmem, size = 0x2000, scoped, tag = 'scratch operand']
  %s0 = inlined_call_operand.vmem [shape: f32[8,256], index: 0, kind: input, shape index: {}]
  %s1 = inlined_call_operand.vmem [shape: f32[8,256], index: 1, kind: input, shape index: {}]
  %s2 = inlined_call_operand.vmem [shape: s32[1,8,256], index: 2, kind: output, shape index: {0}]
  %s3 = inlined_call_operand.vmem [shape: s32[1,8,256], index: 3, kind: output, shape index: {1}]
  %4 = xla_tuple %s2, %s3
  %s5 = sld [smem:[#allocation0]]
  $region34: #{jaccard_loss.1} parent=0
    _
  %s7 = ssub.s32 1, %s5
  %s8 = scalar_select 0, %s7, %s5
  // Predicated region
  $region2: #{jaccard_loss.1} parent=0 // pred_check
    _
  $region3: #{jaccard_loss.1} parent=0 // pred_check_branch
    %10 = sbr.rel (0) target = $region5
  $region4: #{jaccard_loss.1} parent=0 // pred_region
    %s11 = sadd.s32 0, 0
    %p12 = scmp.lt.s32.totalorder %s11, 0
    %s13 = scalar_select %p12, %s11, 0
    %s14 = smul.addr %s13, 2
    %s15 = smul.addr %s14, 8
    %s16 = scalar_lea.vmem %s0, %s15
    %s17 = sadd.s32 0, 0
  $region5: #{jaccard_loss.1} parent=0 // pred_fallthru
    _
  // Predicated region
  $region6: #{jaccard_loss.1} parent=0 // pred_check
    _
  $region7: #{jaccard_loss.1} parent=0 // pred_check_branch
    %19 = sbr.rel (0) target = $region9
  $region8: #{jaccard_loss.1} parent=0 // pred_region
    %s20 = sadd.s32 0, 0
    %p21 = scmp.lt.s32.totalorder %s20, 0
    %s22 = scalar_select %p21, %s20, 0
    %s23 = smul.addr %s22, 2
    %s24 = smul.addr %s23, 8
    %s25 = scalar_lea.vmem %s1, %s24
    %s26 = sadd.s32 0, 0
  $region9: #{jaccard_loss.1} parent=0 // pred_fallthru
    _
  %s27 = sadd.s32 0, 0
  %p28 = scmp.lt.s32.totalorder %s27, 0
  %s29 = scalar_select %p28, %s27, 0
  %s30 = smul.addr %s29, 2
  %s31 = smul.addr %s30, 8
  %s32 = scalar_lea.vmem %s0, %s31
  %s33 = sadd.s32 0, 0
  %p34 = scmp.lt.s32.totalorder %s33, 0
  %s35 = scalar_select %p34, %s33, 0
  %s36 = smul.addr %s35, 2
  %s37 = smul.addr %s36, 8
  %s38 = scalar_lea.vmem %s1, %s37
  %s39 = sadd.s32 0, 0
  %p40 = scmp.lt.s32.totalorder %s39, 0
  %s41 = scalar_select %p40, %s39, 0
  %s42 = smul.addr %s41, 2
  %s43 = smul.addr %s42, 8
  %s44 = scalar_lea.vmem %s0, %s43
  %s45 = sadd.s32 0, 0
  %s46 = sadd.s32 0, 0
  %p47 = scmp.lt.s32.totalorder %s46, 0
  %s48 = scalar_select %p47, %s46, 0
  %s49 = smul.addr %s48, 2
  %s50 = smul.addr %s49, 8
  %s51 = scalar_lea.vmem %s1, %s50
  %s52 = sadd.s32 0, 0
  %p53 = scmp.eq.s32.totalorder 0, 0
  // Predicated region
  $region10: #{jaccard_loss.1} parent=0 // pred_check
    %p54 = pneg %p53
  $region11: #{jaccard_loss.1} parent=0 // pred_check_branch
    %56 = sbr.rel (%p54) target = $region13
  $region12: #{jaccard_loss.1} parent=0 // pred_region
    %57 = vst [vmem:[#allocation2] sm:$0xff] 0
    %58 = vst [vmem:[#allocation2 + $0x8] sm:$0xff] 0
    %59 = vst [vmem:[#allocation3] sm:$0xff] 0
    %60 = vst [vmem:[#allocation3 + $0x8] sm:$0xff] 0
  $region13: #{jaccard_loss.1} parent=0 // pred_fallthru
    _
  %v61 = vld [vmem:[%s44] sm:$0xff]
  %v62 = vld [vmem:[%s44 + $0x8] sm:$0xff]
  %vm63 = vcmp.ne.f32.partialorder %v61, 0.0
  %vm64 = vcmp.ne.f32.partialorder %v62, 0.0
  %v65 = vld [vmem:[%s51] sm:$0xff]
  %v66 = vld [vmem:[%s51 + $0x8] sm:$0xff]
  %vm67 = vcmp.ne.f32.partialorder %v65, 0.0
  %vm68 = vcmp.ne.f32.partialorder %v66, 0.0
  %vm69 = vmand %vm67, %vm63
  %vm70 = vmand %vm68, %vm64
  %vm71 = vmor %vm67, %vm63
  %vm72 = vmor %vm68, %vm64
  %v73 = vsel %vm69, 1, 0
  %v74 = vsel %vm70, 1, 0
  %v75 = vsel %vm71, 1, 0
  %v76 = vsel %vm72, 1, 0
  %v77 = vld [vmem:[#allocation2] sm:$0xff]
  %v78 = vld [vmem:[#allocation2 + $0x8] sm:$0xff]
  %v79 = vadd.s32 %v77, %v73
  %v80 = vadd.s32 %v78, %v74
  %81 = vst [vmem:[#allocation2] sm:$0xff] %v79
  %82 = vst [vmem:[#allocation2 + $0x8] sm:$0xff] %v80
  %v83 = vld [vmem:[#allocation3] sm:$0xff]
  %v84 = vld [vmem:[#allocation3 + $0x8] sm:$0xff]
  %v85 = vadd.s32 %v83, %v75
  %v86 = vadd.s32 %v84, %v76
  %87 = vst [vmem:[#allocation3] sm:$0xff] %v85
  %88 = vst [vmem:[#allocation3 + $0x8] sm:$0xff] %v86
  // Predicated region
  $region14: #{jaccard_loss.1} parent=0 // pred_check
    %p89 = pneg %p53
  $region15: #{jaccard_loss.1} parent=0 // pred_check_branch
    %91 = sbr.rel (%p89) target = $region17
  $region16: #{jaccard_loss.1} parent=0 // pred_region
    %v92 = vld [vmem:[#allocation2] sm:$0xff]
    %v93 = vld [vmem:[#allocation2 + $0x8] sm:$0xff]
    %94 = vst [vmem:[%s2] sm:$0xff] %v92
    %95 = vst [vmem:[%s2 + $0x8] sm:$0xff] %v93
    %v96 = vld [vmem:[#allocation3] sm:$0xff]
    %v97 = vld [vmem:[#allocation3 + $0x8] sm:$0xff]
    %98 = vst [vmem:[%s3] sm:$0xff] %v96
    %99 = vst [vmem:[%s3 + $0x8] sm:$0xff] %v97
  $region17: #{jaccard_loss.1} parent=0 // pred_fallthru
    _
  // Predicated region
  $region18: #{jaccard_loss.1} parent=0 // pred_check
    _
  $region19: #{jaccard_loss.1} parent=0 // pred_check_branch
    %101 = sbr.rel (0) target = $region21
  $region20: #{jaccard_loss.1} parent=0 // pred_region
    _
  $region21: #{jaccard_loss.1} parent=0 // pred_fallthru
    _
  // Predicated region
  $region22: #{jaccard_loss.1} parent=0 // pred_check
    _
  $region23: #{jaccard_loss.1} parent=0 // pred_check_branch
    %103 = sbr.rel (0) target = $region25
  $region24: #{jaccard_loss.1} parent=0 // pred_region
    _
  $region25: #{jaccard_loss.1} parent=0 // pred_fallthru
    _
  // Predicated region
  $region26: #{jaccard_loss.1} parent=0 // pred_check
    _
  $region27: #{jaccard_loss.1} parent=0 // pred_check_branch
    %105 = sbr.rel (0) target = $region29
  $region28: #{jaccard_loss.1} parent=0 // pred_region
    _
  $region29: #{jaccard_loss.1} parent=0 // pred_fallthru
    _
  // Predicated region
  $region30: #{jaccard_loss.1} parent=0 // pred_check
    _
  $region31: #{jaccard_loss.1} parent=0 // pred_check_branch
    %107 = sbr.rel (0) target = $region33
  $region32: #{jaccard_loss.1} parent=0 // pred_region
    _
  $region33: #{jaccard_loss.1} parent=0 // pred_fallthru
    _

</llo_original>
